<compile_context>
chip_gen: v5e
topology: v5e:2x2
jax: 0.10.0
libtpu: 0.0.40
codegen_flags: <defaults>
</compile_context>

<pallas_src>
import functools

import jax
import jax.numpy as jnp
from jax.experimental import pallas as pl
from jax.experimental.pallas import tpu as pltpu

K_IN = 784                # logical input features (28*28)
N_OUT = 10                # logical output classes
N_PAD = 128               # lane-dense padded output width (unmasked stores)
MAX_RESIDENT_WIDTH = 1024 # widths <= this keep W1/W2 fully resident
HIDDEN_CHUNK = 512        # hidden-dim chunk for wider layers


def _round_up(x, m):
    return ((x + m - 1) // m) * m


def _hidden_chunk(width_padded):
    return HIDDEN_CHUNK if width_padded > MAX_RESIDENT_WIDTH else width_padded


def mlp_kernel(x_ref, w1_ref, b1_ref, w2_ref, b2_ref, o_ref):
    """Grid = (batch tiles [parallel], hidden chunks [arbitrary]).
    The f32 output block is resident across the hidden axis and accumulates
    each chunk's contribution; b2 is folded in at chunk 0."""
    j = pl.program_id(1)

    @pl.when(j == 0)
    def _init():
        o_ref[...] = jnp.broadcast_to(b2_ref[...], o_ref.shape)

    # Layer 1 (chunk): cast x to bf16 on the VPU, MXU matmul, f32 accumulation.
    x_bf16 = x_ref[...].astype(jnp.bfloat16)
    h = jnp.dot(x_bf16, w1_ref[...], preferred_element_type=jnp.float32)
    # Bias + ReLU in f32 on the VPU.
    h = jnp.maximum(h + b1_ref[...], 0.0)
    # Layer 2 (chunk): bf16 MXU matmul, accumulate into the resident f32 output.
    o_ref[...] += jnp.dot(h.astype(jnp.bfloat16), w2_ref[...],
                          preferred_element_type=jnp.float32)


def pack_params(w1, b1, w2, b2):
    """One-time packing (call at model load, NOT per forward call):
    bf16 weights for the MXU, W2/b2 zero-padded 10->128 output lanes, and the
    hidden dim zero-padded to a chunk multiple when width > 1024.
    w1: (784, width), b1: (width,), w2: (width, 10), b2: (10,)
    (weights are (in_features, out_features), i.e. transposed vs nn.Linear)."""
    k_in, width = w1.shape
    assert k_in == K_IN
    hc = _hidden_chunk(width if width <= MAX_RESIDENT_WIDTH
                       else _round_up(width, HIDDEN_CHUNK))
    width_p = _round_up(width, hc)

    w1_p = jnp.zeros((K_IN, width_p), jnp.bfloat16)
    w1_p = w1_p.at[:, :width].set(w1.astype(jnp.bfloat16))
    b1_p = jnp.zeros((1, width_p), jnp.float32)
    b1_p = b1_p.at[0, :width].set(b1.astype(jnp.float32))
    w2_p = jnp.zeros((width_p, N_PAD), jnp.bfloat16)
    w2_p = w2_p.at[:width, :N_OUT].set(w2.astype(jnp.bfloat16))
    b2_p = jnp.zeros((1, N_PAD), jnp.float32)
    b2_p = b2_p.at[0, :N_OUT].set(b2.astype(jnp.float32))
    return w1_p, b1_p, w2_p, b2_p


def _pick_batch_tile(B):
    # Small batches: a single tile rounded to the sublane multiple (no blow-up).
    if B <= 512:
        return _round_up(B, 8)
    # Large batches: near-even ~512-row tiles -> minimal padding, >=2 grid
    # steps so v7x's two TensorCores both get work.
    n_tiles = pl.cdiv(B, 512)
    return _round_up(pl.cdiv(B, n_tiles), 8)


@jax.jit
def my_model_forward(x, w1_p, b1_p, w2_p, b2_p):
    """x: any shape with trailing dims multiplying to 784 (e.g. (B,1,28,28)).
    w1_p/b1_p/w2_p/b2_p: outputs of pack_params()."""
    x2d = x.reshape(-1, K_IN)                       # == x.view(-1, 784)
    B = x2d.shape[0]
    width_p = w1_p.shape[1]
    hc = _hidden_chunk(width_p)
    n_hc = width_p // hc

    tb = _pick_batch_tile(B)
    b_pad = _round_up(B, tb)
    if b_pad != B:
        x2d = jnp.pad(x2d, ((0, b_pad - B), (0, 0)))

    x_bytes = jnp.dtype(x2d.dtype).itemsize
    # Rough per-step VMEM footprint (double-buffered streams + f32/bf16 h).
    vmem_est = (2 * tb * K_IN * x_bytes            # x tile
                + 2 * (K_IN * hc * 2 + hc * 4)     # W1 + b1 chunk
                + 2 * (hc * N_PAD * 2 + N_PAD * 4) # W2 chunk + b2
                + 2 * tb * N_PAD * 4               # output tile
                + tb * hc * (4 + 2))               # f32 h + bf16 copy
    vmem_limit = int(min(max(2 * vmem_est, 32 * 1024 * 1024), 48 * 1024 * 1024))

    grid = (b_pad // tb, n_hc)
    out_padded = pl.pallas_call(
        mlp_kernel,
        out_shape=jax.ShapeDtypeStruct((b_pad, N_PAD), jnp.float32),
        grid_spec=pltpu.PrefetchScalarGridSpec(
            num_scalar_prefetch=0,
            grid=grid,
            in_specs=[
                pl.BlockSpec((tb, K_IN), lambda i, j: (i, 0)),     # x (no K pad)
                pl.BlockSpec((K_IN, hc), lambda i, j: (0, j)),     # W1 chunk
                pl.BlockSpec((1, hc), lambda i, j: (0, j)),        # b1 chunk
                pl.BlockSpec((hc, N_PAD), lambda i, j: (j, 0)),    # W2 chunk
                pl.BlockSpec((1, N_PAD), lambda i, j: (0, 0)),     # b2
            ],
            out_specs=pl.BlockSpec((tb, N_PAD), lambda i, j: (i, 0)),
        ),
        compiler_params=pltpu.CompilerParams(
            dimension_semantics=("parallel", "arbitrary"),
            vmem_limit_bytes=vmem_limit),
    )(x2d, w1_p, b1_p, w2_p, b2_p)

    # Drop batch padding and the padded output lanes outside the kernel.
    return out_padded[:B, :N_OUT]


if __name__ == "__main__":
    key = jax.random.PRNGKey(0)
    k_x, k_w1, k_b1, k_w2, k_b2 = jax.random.split(key, 5)

    B = 8          # batch
    width = 128    # hidden width (the `width` constructor arg)

    x = jax.random.normal(k_x, (B, 1, 28, 28), dtype=jnp.float32)
    w1 = jax.random.uniform(k_w1, (784, width), jnp.float32,
                            minval=-1.0, maxval=1.0) / jnp.sqrt(784.0)
    b1 = jax.random.uniform(k_b1, (width,), jnp.float32,
                            minval=-1.0, maxval=1.0) / jnp.sqrt(784.0)
    w2 = jax.random.uniform(k_w2, (width, 10), jnp.float32,
                            minval=-1.0, maxval=1.0) / jnp.sqrt(float(width))
    b2 = jax.random.uniform(k_b2, (10,), jnp.float32,
                            minval=-1.0, maxval=1.0) / jnp.sqrt(float(width))

    # Pack weights ONCE (bf16 cast + lane padding hoisted out of the call path).
    packed = pack_params(w1, b1, w2, b2)
    packed = jax.block_until_ready(packed)

    out = my_model_forward(x, *packed)
    out = jax.block_until_ready(out)

    # Reference using the same bf16 input/weight casts and f32 accumulation.
    xb = x.reshape(-1, 784).astype(jnp.bfloat16).astype(jnp.float32)
    w1b = w1.astype(jnp.bfloat16).astype(jnp.float32)
    w2b = w2.astype(jnp.bfloat16).astype(jnp.float32)
    h_ref = jnp.maximum(xb @ w1b + b1, 0.0)
    ref = h_ref.astype(jnp.bfloat16).astype(jnp.float32) @ w2b + b2

    assert out.shape == (B, 10)
    assert jnp.allclose(out, ref, atol=5e-3, rtol=5e-3), \
        float(jnp.max(jnp.abs(out - ref)))

    print("KERNEL_OK")
</pallas_src>

<mosaic_0001>
module attributes {stable_mosaic.version = 11 : i64} {
  func.func @mlp_kernel(%arg0: i32, %arg1: i32, %arg2: memref<8x784xf32, #tpu.memory_space<vmem>>, %arg3: memref<784x128xbf16, #tpu.memory_space<vmem>>, %arg4: memref<1x128xf32, #tpu.memory_space<vmem>>, %arg5: memref<128x128xbf16, #tpu.memory_space<vmem>>, %arg6: memref<1x128xf32, #tpu.memory_space<vmem>>, %arg7: memref<8x128xf32, #tpu.memory_space<vmem>>) attributes {dimension_semantics = [#tpu.dimension_semantics<parallel>, #tpu.dimension_semantics<arbitrary>], iteration_bounds = array<i64: 1, 1>, scalar_prefetch = 0 : i64, scratch_operands = 0 : i64, tpu.core_type = #tpu.core_type<tc>, window_params = [{transform_indices = @transform_0, window_bounds = array<i64: 8, 784>}, {transform_indices = @transform_1, window_bounds = array<i64: 784, 128>}, {transform_indices = @transform_2, window_bounds = array<i64: 1, 128>}, {transform_indices = @transform_3, window_bounds = array<i64: 128, 128>}, {pipeline_mode = #tpu.pipeline_mode<synchronous>, transform_indices = @transform_4, window_bounds = array<i64: 1, 128>}, {transform_indices = @transform_5, window_bounds = array<i64: 8, 128>}]} {
    %c0_i32 = arith.constant 0 : i32
    %0 = arith.cmpi eq, %arg1, %c0_i32 : i32
    %1 = arith.extui %0 : i1 to i32
    %c0_i32_0 = arith.constant 0 : i32
    %2 = arith.cmpi ne, %1, %c0_i32_0 : i32
    scf.if %2 {
      %c0_14 = arith.constant 0 : index
      %c0_15 = arith.constant 0 : index
      %18 = vector.load %arg6[%c0_14, %c0_15] : memref<1x128xf32, #tpu.memory_space<vmem>>, vector<1x128xf32>
      %19 = vector.shape_cast %18 : vector<1x128xf32> to vector<1x128xf32>
      %20 = vector.broadcast %19 : vector<1x128xf32> to vector<8x128xf32>
      %c0_16 = arith.constant 0 : index
      %c0_17 = arith.constant 0 : index
      %21 = vector.load %arg7[%c0_16, %c0_17] : memref<8x128xf32, #tpu.memory_space<vmem>>, vector<8x128xf32>
      tpu.vector_store %arg7[%c0_16, %c0_17], %20 {strides = array<i32>} : memref<8x128xf32, #tpu.memory_space<vmem>>, vector<8x128xf32>,
    } else {
    }
    %c0 = arith.constant 0 : index
    %c0_1 = arith.constant 0 : index
    %3 = vector.load %arg2[%c0, %c0_1] : memref<8x784xf32, #tpu.memory_space<vmem>>, vector<8x784xf32>
    %4 = arith.truncf %3 : vector<8x784xf32> to vector<8x784xbf16>
    %c0_2 = arith.constant 0 : index
    %c0_3 = arith.constant 0 : index
    %5 = vector.load %arg3[%c0_2, %c0_3] : memref<784x128xbf16, #tpu.memory_space<vmem>>, vector<784x128xbf16>
    %cst = arith.constant dense<0.000000e+00> : vector<8x128xf32>
    %6 = tpu.matmul %4, %5, %cst {dimension_numbers = #tpu.dot_dimension_numbers<[1], [0], [0], [1], [0, 0, 1, 1], [], []>} : vector<8x784xbf16>, vector<784x128xbf16>, vector<8x128xf32> -> vector<8x128xf32>
    %c0_4 = arith.constant 0 : index
    %c0_5 = arith.constant 0 : index
    %7 = vector.load %arg4[%c0_4, %c0_5] : memref<1x128xf32, #tpu.memory_space<vmem>>, vector<1x128xf32>
    %8 = vector.broadcast %7 : vector<1x128xf32> to vector<8x128xf32>
    %9 = arith.addf %6, %8 : vector<8x128xf32>
    %cst_6 = arith.constant 0.000000e+00 : f32
    %10 = vector.broadcast %cst_6 : f32 to vector<8x128xf32>
    %11 = arith.maximumf %9, %10 : vector<8x128xf32>
    %c0_7 = arith.constant 0 : index
    %c0_8 = arith.constant 0 : index
    %12 = vector.load %arg7[%c0_7, %c0_8] : memref<8x128xf32, #tpu.memory_space<vmem>>, vector<8x128xf32>
    %13 = arith.truncf %11 : vector<8x128xf32> to vector<8x128xbf16>
    %c0_9 = arith.constant 0 : index
    %c0_10 = arith.constant 0 : index
    %14 = vector.load %arg5[%c0_9, %c0_10] : memref<128x128xbf16, #tpu.memory_space<vmem>>, vector<128x128xbf16>
    %cst_11 = arith.constant dense<0.000000e+00> : vector<8x128xf32>
    %15 = tpu.matmul %13, %14, %cst_11 {dimension_numbers = #tpu.dot_dimension_numbers<[1], [0], [0], [1], [0, 0, 1, 1], [], []>} : vector<8x128xbf16>, vector<128x128xbf16>, vector<8x128xf32> -> vector<8x128xf32>
    %16 = arith.addf %12, %15 : vector<8x128xf32>
    %c0_12 = arith.constant 0 : index
    %c0_13 = arith.constant 0 : index
    %17 = vector.load %arg7[%c0_12, %c0_13] : memref<8x128xf32, #tpu.memory_space<vmem>>, vector<8x128xf32>
    tpu.vector_store %arg7[%c0_12, %c0_13], %16 {strides = array<i32>} : memref<8x128xf32, #tpu.memory_space<vmem>>, vector<8x128xf32>,
    return
  }
  func.func @transform_0(%arg0: i32, %arg1: i32) -> (i32, i32) {
    %c0_i32 = arith.constant 0 : i32
    %c0_i32_0 = arith.constant 0 : i32
    return %arg0, %c0_i32 : i32, i32
  }
  func.func @transform_1(%arg0: i32, %arg1: i32) -> (i32, i32) {
    %c0_i32 = arith.constant 0 : i32
    %c0_i32_0 = arith.constant 0 : i32
    return %c0_i32, %arg1 : i32, i32
  }
  func.func @transform_2(%arg0: i32, %arg1: i32) -> (i32, i32) {
    %c0_i32 = arith.constant 0 : i32
    %c0_i32_0 = arith.constant 0 : i32
    return %c0_i32, %arg1 : i32, i32
  }
  func.func @transform_3(%arg0: i32, %arg1: i32) -> (i32, i32) {
    %c0_i32 = arith.constant 0 : i32
    %c0_i32_0 = arith.constant 0 : i32
    return %arg1, %c0_i32 : i32, i32
  }
  func.func @transform_4(%arg0: i32, %arg1: i32) -> (i32, i32) {
    %c0_i32 = arith.constant 0 : i32
    %c0_i32_0 = arith.constant 0 : i32
    %c0_i32_1 = arith.constant 0 : i32
    return %c0_i32, %c0_i32_0 : i32, i32
  }
  func.func @transform_5(%arg0: i32, %arg1: i32) -> (i32, i32) {
    %c0_i32 = arith.constant 0 : i32
    %c0_i32_0 = arith.constant 0 : i32
    return %arg0, %c0_i32 : i32, i32
  }
}

</mosaic_0001>

<llo_original>
// kernel: my_model_forward.1
$region0: #{my_model_forward.1}
  #allocation0 [shape = 'u32[]', space=smem, size = 0x4, offset = 0x4, fixed_abs, tag = 'smem constant byte address 0x4 - core index']
  #allocation1 [shape = 'u32[72,128]{1,0:T(1,128)}', space=vmem, size = 0x9000, scoped, tag = 'internal scratch']
  %s0 = inlined_call_operand.vmem [shape: f32[8,784], index: 0, kind: input, shape index: {}]
  %s1 = inlined_call_operand.vmem [shape: bf16[784,128], index: 1, kind: input, shape index: {}]
  %s2 = inlined_call_operand.vmem [shape: f32[1,128], index: 2, kind: input, shape index: {}]
  %s3 = inlined_call_operand.vmem [shape: bf16[128,128], index: 3, kind: input, shape index: {}]
  %s4 = inlined_call_operand.vmem [shape: f32[1,128], index: 4, kind: input, shape index: {}]
  %s5 = inlined_call_operand.hbm [shape: f32[8,128], index: 5, kind: output, shape index: {}]
  %s6 = sld [smem:[#allocation0]]
  $region34: #{my_model_forward.1} parent=0
    _
  %s8 = ssub.s32 1, %s6
  %s9 = scalar_select 0, %s8, %s6
  $region1: #{my_model_forward.1} parent=0
    #allocation2 [shape = 'u8[4096]{0}', space=vmem, size = 0x1000, scoped, tag = 'output window, operand 0, single buffered']
    #allocation3 [shape = 's32[1]{0}', space=sflag, size = 0x4, scoped, tag = 'scoped memory for my_model_forward.1']
    %10 = vsyncpa [#allocation3], 0
    // Predicated region
    $region2: #{my_model_forward.1} parent=1 // pred_check
      _
    $region3: #{my_model_forward.1} parent=1 // pred_check_branch
      %12 = sbr.rel (0) target = $region5
    $region4: #{my_model_forward.1} parent=1 // pred_region
      _
    $region5: #{my_model_forward.1} parent=1 // pred_fallthru
      _
    // Predicated region
    $region6: #{my_model_forward.1} parent=1 // pred_check
      _
    $region7: #{my_model_forward.1} parent=1 // pred_check_branch
      %14 = sbr.rel (0) target = $region9
    $region8: #{my_model_forward.1} parent=1 // pred_region
      _
    $region9: #{my_model_forward.1} parent=1 // pred_fallthru
      _
    // Predicated region
    $region10: #{my_model_forward.1} parent=1 // pred_check
      _
    $region11: #{my_model_forward.1} parent=1 // pred_check_branch
      %16 = sbr.rel (0) target = $region13
    $region12: #{my_model_forward.1} parent=1 // pred_region
      _
    $region13: #{my_model_forward.1} parent=1 // pred_fallthru
      _
    // Predicated region
    $region14: #{my_model_forward.1} parent=1 // pred_check
      _
    $region15: #{my_model_forward.1} parent=1 // pred_check_branch
      %18 = sbr.rel (0) target = $region17
    $region16: #{my_model_forward.1} parent=1 // pred_region
      _
    $region17: #{my_model_forward.1} parent=1 // pred_fallthru
      _
    // Predicated region
    $region18: #{my_model_forward.1} parent=1 // pred_check
      _
    $region19: #{my_model_forward.1} parent=1 // pred_check_branch
      %20 = sbr.rel (0) target = $region21
    $region20: #{my_model_forward.1} parent=1 // pred_region
      _
    $region21: #{my_model_forward.1} parent=1 // pred_fallthru
      _
    %p22 = scmp.eq.s32.totalorder 0, 0
    // Predicated region
    $region22: #{my_model_forward.1} parent=1 // pred_check
      %p23 = pneg %p22
    $region23: #{my_model_forward.1} parent=1 // pred_check_branch
      %25 = sbr.rel (%p23) target = $region25
    $region24: #{my_model_forward.1} parent=1 // pred_region
      %v26 = vld [vmem:[%s4] sm:$0x1]
      %v28 = vperm.slane %v26, 0
      %30 = vst [vmem:[#allocation2] sm:$0xff] %v28
    $region25: #{my_model_forward.1} parent=1 // pred_fallthru
      _
    %v31 = vld [vmem:[%s0] sm:$0xff]
    %v32 = vld [vmem:[%s0 + $0x8] sm:$0xff]
    %v33 = vld [vmem:[%s0 + $0x10] sm:$0xff]
    %v34 = vld [vmem:[%s0 + $0x18] sm:$0xff]
    %v35 = vld [vmem:[%s0 + $0x20] sm:$0xff]
    %v36 = vld [vmem:[%s0 + $0x28] sm:$0xff]
    %v37 = vld [vmem:[%s0 + $0x30] sm:$0xff]
    %v38 = vpack.c.bf16 %v31, %v31
    %v39 = vpack.c.bf16 %v32, %v32
    %v40 = vpack.c.bf16 %v33, %v33
    %v41 = vpack.c.bf16 %v34, %v34
    %v42 = vpack.c.bf16 %v35, %v35
    %v43 = vpack.c.bf16 %v36, %v36
    %v44 = vpack.c.bf16 %v37, %v37
    %v45 = vld [vmem:[%s1] sm:$0xf]
    %v46 = vld [vmem:[%s1 + $0x4] sm:$0xf]
    %v47 = vld [vmem:[%s1 + $0x8] sm:$0xf]
    %v48 = vld [vmem:[%s1 + $0xc] sm:$0xf]
    %v49 = vld [vmem:[%s1 + $0x10] sm:$0xf]
    %v50 = vld [vmem:[%s1 + $0x14] sm:$0xf]
    %v51 = vld [vmem:[%s1 + $0x18] sm:$0xf]
    %v52 = vld [vmem:[%s1 + $0x1c] sm:$0xf]
    %v53 = vld [vmem:[%s1 + $0x20] sm:$0xf]
    %v54 = vld [vmem:[%s1 + $0x24] sm:$0xf]
    %v55 = vld [vmem:[%s1 + $0x28] sm:$0xf]
    %v56 = vld [vmem:[%s1 + $0x2c] sm:$0xf]
    %v57 = vld [vmem:[%s1 + $0x30] sm:$0xf]
    %v58 = vld [vmem:[%s1 + $0x34] sm:$0xf]
    %v59 = vld [vmem:[%s1 + $0x38] sm:$0xf]
    %v60 = vld [vmem:[%s1 + $0x3c] sm:$0xf]
    %v61 = vld [vmem:[%s1 + $0x40] sm:$0xf]
    %v62 = vld [vmem:[%s1 + $0x44] sm:$0xf]
    %v63 = vld [vmem:[%s1 + $0x48] sm:$0xf]
    %v64 = vld [vmem:[%s1 + $0x4c] sm:$0xf]
    %v65 = vld [vmem:[%s1 + $0x50] sm:$0xf]
    %v66 = vld [vmem:[%s1 + $0x54] sm:$0xf]
    %v67 = vld [vmem:[%s1 + $0x58] sm:$0xf]
    %v68 = vld [vmem:[%s1 + $0x5c] sm:$0xf]
    %v69 = vld [vmem:[%s1 + $0x60] sm:$0xf]
    %v70 = vld [vmem:[%s1 + $0x64] sm:$0xf]
    %v71 = vld [vmem:[%s1 + $0x68] sm:$0xf]
    %v72 = vld [vmem:[%s1 + $0x6c] sm:$0xf]
    %v73 = vld [vmem:[%s1 + $0x70] sm:$0xf]
    %v74 = vld [vmem:[%s1 + $0x74] sm:$0xf]
    %v75 = vld [vmem:[%s1 + $0x78] sm:$0xf]
    %v76 = vld [vmem:[%s1 + $0x7c] sm:$0xf]
    %v77 = vld [vmem:[%s1 + $0x80] sm:$0xf]
    %v78 = vld [vmem:[%s1 + $0x84] sm:$0xf]
    %v79 = vld [vmem:[%s1 + $0x88] sm:$0xf]
    %v80 = vld [vmem:[%s1 + $0x8c] sm:$0xf]
    %v81 = vld [vmem:[%s1 + $0x90] sm:$0xf]
    %v82 = vld [vmem:[%s1 + $0x94] sm:$0xf]
    %v83 = vld [vmem:[%s1 + $0x98] sm:$0xf]
    %v84 = vld [vmem:[%s1 + $0x9c] sm:$0xf]
    %v85 = vld [vmem:[%s1 + $0xa0] sm:$0xf]
    %v86 = vld [vmem:[%s1 + $0xa4] sm:$0xf]
    %v87 = vld [vmem:[%s1 + $0xa8] sm:$0xf]
    %v88 = vld [vmem:[%s1 + $0xac] sm:$0xf]
    %v89 = vld [vmem:[%s1 + $0xb0] sm:$0xf]
    %v90 = vld [vmem:[%s1 + $0xb4] sm:$0xf]
    %v91 = vld [vmem:[%s1 + $0xb8] sm:$0xf]
    %v92 = vld [vmem:[%s1 + $0xbc] sm:$0xf]
    %v93 = vld [vmem:[%s1 + $0xc0] sm:$0xf]
    %v94 = vld [vmem:[%s1 + $0xc4] sm:$0xf]
    %v95 = vld [vmem:[%s1 + $0xc8] sm:$0xf]
    %v96 = vld [vmem:[%s1 + $0xcc] sm:$0xf]
    %v97 = vld [vmem:[%s1 + $0xd0] sm:$0xf]
    %v98 = vld [vmem:[%s1 + $0xd4] sm:$0xf]
    %v99 = vld [vmem:[%s1 + $0xd8] sm:$0xf]
    %v100 = vld [vmem:[%s1 + $0xdc] sm:$0xf]
    %v101 = vld [vmem:[%s1 + $0xe0] sm:$0xf]
    %v102 = vld [vmem:[%s1 + $0xe4] sm:$0xf]
    %v103 = vld [vmem:[%s1 + $0xe8] sm:$0xf]
    %v104 = vld [vmem:[%s1 + $0xec] sm:$0xf]
    %v105 = vld [vmem:[%s1 + $0xf0] sm:$0xf]
    %v106 = vld [vmem:[%s1 + $0xf4] sm:$0xf]
    %v107 = vld [vmem:[%s1 + $0xf8] sm:$0xf]
    %v108 = vld [vmem:[%s1 + $0xfc] sm:$0xf]
    %v109 = vld [vmem:[%s1 + $0x100] sm:$0xf]
    %v110 = vld [vmem:[%s1 + $0x104] sm:$0xf]
    %v111 = vld [vmem:[%s1 + $0x108] sm:$0xf]
    %v112 = vld [vmem:[%s1 + $0x10c] sm:$0xf]
    %v113 = vld [vmem:[%s1 + $0x110] sm:$0xf]
    %v114 = vld [vmem:[%s1 + $0x114] sm:$0xf]
    %v115 = vld [vmem:[%s1 + $0x118] sm:$0xf]
    %v116 = vld [vmem:[%s1 + $0x11c] sm:$0xf]
    %v117 = vld [vmem:[%s1 + $0x120] sm:$0xf]
    %v118 = vld [vmem:[%s1 + $0x124] sm:$0xf]
    %v119 = vld [vmem:[%s1 + $0x128] sm:$0xf]
    %v120 = vld [vmem:[%s1 + $0x12c] sm:$0xf]
    %v121 = vld [vmem:[%s1 + $0x130] sm:$0xf]
    %v122 = vld [vmem:[%s1 + $0x134] sm:$0xf]
    %v123 = vld [vmem:[%s1 + $0x138] sm:$0xf]
    %v124 = vld [vmem:[%s1 + $0x13c] sm:$0xf]
    %v125 = vld [vmem:[%s1 + $0x140] sm:$0xf]
    %v126 = vld [vmem:[%s1 + $0x144] sm:$0xf]
    %v127 = vld [vmem:[%s1 + $0x148] sm:$0xf]
    %v128 = vld [vmem:[%s1 + $0x14c] sm:$0xf]
    %v129 = vld [vmem:[%s1 + $0x150] sm:$0xf]
    %v130 = vld [vmem:[%s1 + $0x154] sm:$0xf]
    %v131 = vld [vmem:[%s1 + $0x158] sm:$0xf]
    %v132 = vld [vmem:[%s1 + $0x15c] sm:$0xf]
    %v133 = vld [vmem:[%s1 + $0x160] sm:$0xf]
    %v134 = vld [vmem:[%s1 + $0x164] sm:$0xf]
    %v135 = vld [vmem:[%s1 + $0x168] sm:$0xf]
    %v136 = vld [vmem:[%s1 + $0x16c] sm:$0xf]
    %v137 = vld [vmem:[%s1 + $0x170] sm:$0xf]
    %v138 = vld [vmem:[%s1 + $0x174] sm:$0xf]
    %v139 = vld [vmem:[%s1 + $0x178] sm:$0xf]
    %v140 = vld [vmem:[%s1 + $0x17c] sm:$0xf]
    %v141 = vld [vmem:[%s1 + $0x180] sm:$0xf]
    %v142 = vld [vmem:[%s1 + $0x184] sm:$0xf]
    %v143 = vld [vmem:[%s2] sm:$0x1]
    %v145 = vperm.slane %v143, 0
    %v245 = vunpack.c.l.b16 %v45
    %v246 = vunpack.c.l.b16 %v46
    %v247 = vunpack.c.l.b16 %v47
    %v248 = vunpack.c.l.b16 %v48
    %v249 = vunpack.c.l.b16 %v49
    %v250 = vunpack.c.l.b16 %v50
    %v251 = vunpack.c.l.b16 %v51
    %v252 = vunpack.c.l.b16 %v52
    %v253 = vunpack.c.l.b16 %v53
    %v254 = vunpack.c.l.b16 %v54
    %v255 = vunpack.c.l.b16 %v55
    %v256 = vunpack.c.l.b16 %v56
    %v257 = vunpack.c.l.b16 %v57
    %v258 = vunpack.c.l.b16 %v58
    %v259 = vunpack.c.l.b16 %v59
    %v260 = vunpack.c.l.b16 %v60
    %v261 = vunpack.c.l.b16 %v61
    %v262 = vunpack.c.l.b16 %v62
    %v263 = vunpack.c.l.b16 %v63
    %v264 = vunpack.c.l.b16 %v64
    %v265 = vunpack.c.l.b16 %v65
    %v266 = vunpack.c.l.b16 %v66
    %v267 = vunpack.c.l.b16 %v67
    %v268 = vunpack.c.l.b16 %v68
    %v269 = vunpack.c.l.b16 %v69
    %v270 = vunpack.c.l.b16 %v70
    %v271 = vunpack.c.l.b16 %v71
    %v272 = vunpack.c.l.b16 %v72
    %v273 = vunpack.c.l.b16 %v73
    %v274 = vunpack.c.l.b16 %v74
    %v275 = vunpack.c.l.b16 %v75
    %v276 = vunpack.c.l.b16 %v76
    %v277 = vunpack.c.l.b16 %v77
    %v278 = vunpack.c.l.b16 %v78
    %v279 = vunpack.c.l.b16 %v79
    %v280 = vunpack.c.l.b16 %v80
    %v281 = vunpack.c.l.b16 %v81
    %v282 = vunpack.c.l.b16 %v82
    %v283 = vunpack.c.l.b16 %v83
    %v284 = vunpack.c.l.b16 %v84
    %v285 = vunpack.c.l.b16 %v85
    %v286 = vunpack.c.l.b16 %v86
    %v287 = vunpack.c.l.b16 %v87
    %v288 = vunpack.c.l.b16 %v88
    %v289 = vunpack.c.l.b16 %v89
    %v290 = vunpack.c.l.b16 %v90
    %v291 = vunpack.c.l.b16 %v91
    %v292 = vunpack.c.l.b16 %v92
    %v293 = vunpack.c.l.b16 %v93
    %v294 = vunpack.c.l.b16 %v94
    %v295 = vunpack.c.l.b16 %v95
    %v296 = vunpack.c.l.b16 %v96
    %v297 = vunpack.c.l.b16 %v97
    %v298 = vunpack.c.l.b16 %v98
    %v299 = vunpack.c.l.b16 %v99
    %v300 = vunpack.c.l.b16 %v100
    %v301 = vunpack.c.l.b16 %v101
    %v302 = vunpack.c.l.b16 %v102
    %v303 = vunpack.c.l.b16 %v103
    %v304 = vunpack.c.l.b16 %v104
    %v305 = vunpack.c.l.b16 %v105
    %v306 = vunpack.c.l.b16 %v106
    %v307 = vunpack.c.l.b16 %v107
    %v308 = vunpack.c.l.b16 %v108
    %v309 = vunpack.c.l.b16 %v109
    %v310 = vunpack.c.l.b16 %v110
    %v311 = vunpack.c.l.b16 %v111
    %v312 = vunpack.c.l.b16 %v112
    %v313 = vunpack.c.l.b16 %v113
    %v314 = vunpack.c.l.b16 %v114
    %v315 = vunpack.c.l.b16 %v115
    %v316 = vunpack.c.l.b16 %v116
    %v317 = vunpack.c.l.b16 %v117
    %v318 = vunpack.c.l.b16 %v118
    %v319 = vunpack.c.l.b16 %v119
    %v320 = vunpack.c.l.b16 %v120
    %v321 = vunpack.c.l.b16 %v121
    %v322 = vunpack.c.l.b16 %v122
    %v323 = vunpack.c.l.b16 %v123
    %v324 = vunpack.c.l.b16 %v124
    %v325 = vunpack.c.l.b16 %v125
    %v326 = vunpack.c.l.b16 %v126
    %v327 = vunpack.c.l.b16 %v127
    %v328 = vunpack.c.l.b16 %v128
    %v329 = vunpack.c.l.b16 %v129
    %v330 = vunpack.c.l.b16 %v130
    %v331 = vunpack.c.l.b16 %v131
    %v332 = vunpack.c.l.b16 %v132
    %v333 = vunpack.c.l.b16 %v133
    %v334 = vunpack.c.l.b16 %v134
    %v335 = vunpack.c.l.b16 %v135
    %v336 = vunpack.c.l.b16 %v136
    %v337 = vunpack.c.l.b16 %v137
    %v338 = vunpack.c.l.b16 %v138
    %v339 = vunpack.c.l.b16 %v139
    %v340 = vunpack.c.l.b16 %v140
    %v341 = vunpack.c.l.b16 %v141
    %v342 = vunpack.c.l.b16 %v142
    %v343 = vpack.c.b16 %v246, %v245
    %v344 = vpack.c.b16 %v248, %v247
    %v345 = vpack.c.b16 %v250, %v249
    %v346 = vpack.c.b16 %v252, %v251
    %v347 = vpack.c.b16 %v254, %v253
    %v348 = vpack.c.b16 %v256, %v255
    %v349 = vpack.c.b16 %v258, %v257
    %v350 = vpack.c.b16 %v260, %v259
    %v351 = vpack.c.b16 %v262, %v261
    %v352 = vpack.c.b16 %v264, %v263
    %v353 = vpack.c.b16 %v266, %v265
    %v354 = vpack.c.b16 %v268, %v267
    %v355 = vpack.c.b16 %v270, %v269
    %v356 = vpack.c.b16 %v272, %v271
    %v357 = vpack.c.b16 %v274, %v273
    %v358 = vpack.c.b16 %v276, %v275
    %v359 = vpack.c.b16 %v278, %v277
    %v360 = vpack.c.b16 %v280, %v279
    %v361 = vpack.c.b16 %v282, %v281
    %v362 = vpack.c.b16 %v284, %v283
    %v363 = vpack.c.b16 %v286, %v285
    %v364 = vpack.c.b16 %v288, %v287
    %v365 = vpack.c.b16 %v290, %v289
    %v366 = vpack.c.b16 %v292, %v291
    %v367 = vpack.c.b16 %v294, %v293
    %v368 = vpack.c.b16 %v296, %v295
    %v369 = vpack.c.b16 %v298, %v297
    %v370 = vpack.c.b16 %v300, %v299
    %v371 = vpack.c.b16 %v302, %v301
    %v372 = vpack.c.b16 %v304, %v303
    %v373 = vpack.c.b16 %v306, %v305
    %v374 = vpack.c.b16 %v308, %v307
    %v375 = vpack.c.b16 %v310, %v309
    %v376 = vpack.c.b16 %v312, %v311
    %v377 = vpack.c.b16 %v314, %v313
    %v378 = vpack.c.b16 %v316, %v315
    %v379 = vpack.c.b16 %v318, %v317
    %v380 = vpack.c.b16 %v320, %v319
    %v381 = vpack.c.b16 %v322, %v321
    %v382 = vpack.c.b16 %v324, %v323
    %v383 = vpack.c.b16 %v326, %v325
    %v384 = vpack.c.b16 %v328, %v327
    %v385 = vpack.c.b16 %v330, %v329
    %v386 = vpack.c.b16 %v332, %v331
    %v387 = vpack.c.b16 %v334, %v333
    %v388 = vpack.c.b16 %v336, %v335
    %v389 = vpack.c.b16 %v338, %v337
    %v390 = vpack.c.b16 %v340, %v339
    %v391 = vpack.c.b16 %v342, %v341
    %vm441 = vcmask 130048
    %v443 = vsel %vm441, %v44, 0
    %445 = vmatpush.bf16.msra.mxu0 %v350
    %446 = vmatpush.bf16.msra.mxu0 %v349
    %447 = vmatpush.bf16.msra.mxu0 %v348
    %448 = vmatpush.bf16.msra.mxu0 %v347
    %449 = vmatpush.bf16.msra.mxu0 %v346
    %450 = vmatpush.bf16.msra.mxu0 %v345
    %451 = vmatpush.bf16.msra.mxu0 %v344
    %452 = vmatpush.bf16.msra.mxu0 %v343
    %453 = vmatmul.bf16.gmra.mxu0 %v38
    %v454 = vpop.f32.mrf.mxu0
    %v455 = vadd.f32 %v145, %v454
    %v456 = vpop.f32.mrf.mxu0
    %457 = vdwg.mxu0
    %458 = vmatpush.bf16.msra.mxu0 %v358
    %459 = vmatpush.bf16.msra.mxu0 %v357
    %460 = vmatpush.bf16.msra.mxu0 %v356
    %461 = vmatpush.bf16.msra.mxu0 %v355
    %462 = vmatpush.bf16.msra.mxu0 %v354
    %463 = vmatpush.bf16.msra.mxu0 %v353
    %464 = vmatpush.bf16.msra.mxu0 %v352
    %465 = vmatpush.bf16.msra.mxu0 %v351
    %466 = vmatmul.bf16.gmra.mxu0 %v39
    %v467 = vpop.f32.mrf.mxu0
    %v468 = vadd.f32 %v455, %v467
    %v469 = vpop.f32.mrf.mxu0
    %470 = vdwg.mxu0
    %471 = vmatpush.bf16.msra.mxu0 %v366
    %472 = vmatpush.bf16.msra.mxu0 %v365
    %473 = vmatpush.bf16.msra.mxu0 %v364
    %474 = vmatpush.bf16.msra.mxu0 %v363
    %475 = vmatpush.bf16.msra.mxu0 %v362
    %476 = vmatpush.bf16.msra.mxu0 %v361
    %477 = vmatpush.bf16.msra.mxu0 %v360
    %478 = vmatpush.bf16.msra.mxu0 %v359
    %479 = vmatmul.bf16.gmra.mxu0 %v40
    %v480 = vpop.f32.mrf.mxu0
    %v481 = vadd.f32 %v468, %v480
    %v482 = vpop.f32.mrf.mxu0
    %483 = vdwg.mxu0
    %484 = vmatpush.bf16.msra.mxu0 %v374
    %485 = vmatpush.bf16.msra.mxu0 %v373
    %486 = vmatpush.bf16.msra.mxu0 %v372
    %487 = vmatpush.bf16.msra.mxu0 %v371
    %488 = vmatpush.bf16.msra.mxu0 %v370
    %489 = vmatpush.bf16.msra.mxu0 %v369
    %490 = vmatpush.bf16.msra.mxu0 %v368
    %491 = vmatpush.bf16.msra.mxu0 %v367
    %492 = vmatmul.bf16.gmra.mxu0 %v41
    %v493 = vpop.f32.mrf.mxu0
    %v494 = vadd.f32 %v481, %v493
    %v495 = vpop.f32.mrf.mxu0
    %496 = vdwg.mxu0
    %497 = vmatpush.bf16.msra.mxu0 %v382
    %498 = vmatpush.bf16.msra.mxu0 %v381
    %499 = vmatpush.bf16.msra.mxu0 %v380
    %500 = vmatpush.bf16.msra.mxu0 %v379
    %501 = vmatpush.bf16.msra.mxu0 %v378
    %502 = vmatpush.bf16.msra.mxu0 %v377
    %503 = vmatpush.bf16.msra.mxu0 %v376
    %504 = vmatpush.bf16.msra.mxu0 %v375
    %505 = vmatmul.bf16.gmra.mxu0 %v42
    %v506 = vpop.f32.mrf.mxu0
    %v507 = vadd.f32 %v494, %v506
    %v508 = vpop.f32.mrf.mxu0
    %509 = vdwg.mxu0
    %510 = vmatpush.bf16.msra.mxu0 %v390
    %511 = vmatpush.bf16.msra.mxu0 %v389
    %512 = vmatpush.bf16.msra.mxu0 %v388
    %513 = vmatpush.bf16.msra.mxu0 %v387
    %514 = vmatpush.bf16.msra.mxu0 %v386
    %515 = vmatpush.bf16.msra.mxu0 %v385
    %516 = vmatpush.bf16.msra.mxu0 %v384
    %517 = vmatpush.bf16.msra.mxu0 %v383
    %518 = vmatmul.bf16.gmra.mxu0 %v43
    %v519 = vpop.f32.mrf.mxu0
    %v520 = vadd.f32 %v507, %v519
    %v521 = vpop.f32.mrf.mxu0
    %522 = vdwg.mxu0
    %523 = vmatpush.bf16.msra.mxu0 0
    %524 = vmatpush.bf16.msra.mxu0 0
    %525 = vmatpush.bf16.msra.mxu0 0
    %526 = vmatpush.bf16.msra.mxu0 0
    %527 = vmatpush.bf16.msra.mxu0 0
    %528 = vmatpush.bf16.msra.mxu0 0
    %529 = vmatpush.bf16.msra.mxu0 0
    %530 = vmatpush.bf16.msra.mxu0 %v391
    %531 = vmatmul.bf16.gmra.mxu0 %v443
    %v532 = vpop.f32.mrf.mxu0
    %v533 = vadd.f32 %v520, %v532
    %v534 = vpop.f32.mrf.mxu0
    %535 = vdwg.mxu0
    %v536 = vmax.f32 %v533, 0.0
    %v537 = vld [vmem:[#allocation2] sm:$0xff]
    %v538 = vpack.c.bf16 %v536, %v536
    %v539 = vld [vmem:[%s3] sm:$0xf]
    %v540 = vld [vmem:[%s3 + $0x4] sm:$0xf]
    %v541 = vld [vmem:[%s3 + $0x8] sm:$0xf]
    %v542 = vld [vmem:[%s3 + $0xc] sm:$0xf]
    %v543 = vld [vmem:[%s3 + $0x10] sm:$0xf]
    %v544 = vld [vmem:[%s3 + $0x14] sm:$0xf]
    %v545 = vld [vmem:[%s3 + $0x18] sm:$0xf]
    %v546 = vld [vmem:[%s3 + $0x1c] sm:$0xf]
    %v547 = vld [vmem:[%s3 + $0x20] sm:$0xf]
    %v548 = vld [vmem:[%s3 + $0x24] sm:$0xf]
    %v549 = vld [vmem:[%s3 + $0x28] sm:$0xf]
    %v550 = vld [vmem:[%s3 + $0x2c] sm:$0xf]
    %v551 = vld [vmem:[%s3 + $0x30] sm:$0xf]
    %v552 = vld [vmem:[%s3 + $0x34] sm:$0xf]
    %v553 = vld [vmem:[%s3 + $0x38] sm:$0xf]
    %v554 = vld [vmem:[%s3 + $0x3c] sm:$0xf]
    %v571 = vunpack.c.l.b16 %v539
    %v572 = vunpack.c.l.b16 %v540
    %v573 = vunpack.c.l.b16 %v541
    %v574 = vunpack.c.l.b16 %v542
    %v575 = vunpack.c.l.b16 %v543
    %v576 = vunpack.c.l.b16 %v544
    %v577 = vunpack.c.l.b16 %v545
    %v578 = vunpack.c.l.b16 %v546
    %v579 = vunpack.c.l.b16 %v547
    %v580 = vunpack.c.l.b16 %v548
    %v581 = vunpack.c.l.b16 %v549
    %v582 = vunpack.c.l.b16 %v550
    %v583 = vunpack.c.l.b16 %v551
    %v584 = vunpack.c.l.b16 %v552
    %v585 = vunpack.c.l.b16 %v553
    %v586 = vunpack.c.l.b16 %v554
    %v587 = vpack.c.b16 %v572, %v571
    %v588 = vpack.c.b16 %v574, %v573
    %v589 = vpack.c.b16 %v576, %v575
    %v590 = vpack.c.b16 %v578, %v577
    %v591 = vpack.c.b16 %v580, %v579
    %v592 = vpack.c.b16 %v582, %v581
    %v593 = vpack.c.b16 %v584, %v583
    %v594 = vpack.c.b16 %v586, %v585
    %603 = vmatpush.bf16.msra.mxu0 %v594
    %604 = vmatpush.bf16.msra.mxu0 %v593
    %605 = vmatpush.bf16.msra.mxu0 %v592
    %606 = vmatpush.bf16.msra.mxu0 %v591
    %607 = vmatpush.bf16.msra.mxu0 %v590
    %608 = vmatpush.bf16.msra.mxu0 %v589
    %609 = vmatpush.bf16.msra.mxu0 %v588
    %610 = vmatpush.bf16.msra.mxu0 %v587
    %611 = vmatmul.bf16.gmra.mxu0 %v538
    %v612 = vpop.f32.mrf.mxu0
    %v613 = vadd.f32 0.0, %v612
    %v614 = vpop.f32.mrf.mxu0
    %615 = vdwg.mxu0
    %v616 = vadd.f32 %v537, %v613
    %617 = vst [vmem:[#allocation2] sm:$0xff] %v616
    // Predicated region
    $region26: #{my_model_forward.1} parent=1 // pred_check
      _
    $region27: #{my_model_forward.1} parent=1 // pred_check_branch
      %619 = sbr.rel (0) target = $region29
    $region28: #{my_model_forward.1} parent=1 // pred_region
      %621 = vsyncadd [#allocation3], 0
      %s623 = sshll.u32 [#allocation2], 4
      %s624 = int_to_ptr.vmem [resolvable:$true] %s623
      %s625 = sshll.u32 %s5, 4
      %s626 = int_to_ptr.hbm [resolvable:$true] %s625
      %628 = dma.vmem_to_hbm [thread:$0]  %s624, 128, %s626, [#allocation3]
    $region29: #{my_model_forward.1} parent=1 // pred_fallthru
      _
    // Predicated region
    $region30: #{my_model_forward.1} parent=1 // pred_check
      _
    $region31: #{my_model_forward.1} parent=1 // pred_check_branch
      %630 = sbr.rel (0) target = $region33
    $region32: #{my_model_forward.1} parent=1 // pred_region
      %632 = dma.done [#allocation3], 128
    $region33: #{my_model_forward.1} parent=1 // pred_fallthru
      _
    %633 = vsyncpa [#allocation3], 1

</llo_original>
